<compile_context>
chip_gen: v7x
topology: tpu7x:2x2x1
jax: 0.10.0
libtpu: 0.0.40
codegen_flags: <defaults>
</compile_context>

<pallas_src>
import functools

import jax
import jax.numpy as jnp
from jax.experimental import pallas as pl
from jax.experimental.pallas import tpu as pltpu


def _round_up(v, m):
    return (v + m - 1) // m * m


# ---------------------------------------------------------------------------
# Generation-aware tile / VMEM-budget helpers.
# ---------------------------------------------------------------------------
def _vmem_capacity_bytes():
    try:
        return int(pltpu.get_tpu_info().vmem_capacity_bytes)
    except Exception:
        return 64 * 1024 * 1024  # conservative (v7x per-TC figure)


def _per_token_bytes(i_tile, H_pad, E_pad, bpe):
    # Per-token VMEM bytes of everything that scales with t_tile.
    return (2 * H_pad * bpe      # x block (double-buffered, compute dtype)
            + 2 * E_pad * 4      # combine weights (double-buffered, f32)
            + 2 * H_pad * 4      # f32 output accumulator (double-buffered)
            + 3 * i_tile * 4     # h1/h3/hidden f32 intermediates
            + i_tile * bpe       # hidden recast to compute dtype
            + 512)               # (Tt,1) w_col scratch, padded to 128 lanes


def _weight_block_bytes(i_tile, H_pad, bpe):
    # Fused w13 (Hp, 2*It) + w2 (It, Hp), double-buffered.
    return 2 * 3 * H_pad * i_tile * bpe


def _pick_i_tile(I_pad, H_pad, bpe, vmem_cap):
    budget = int(0.75 * vmem_cap)
    gen_cap = 512 if vmem_cap < (96 << 20) else 1024   # v7x: keep weight blocks small
    for cand in (1024, 512, 256, 128):
        if cand > gen_cap or cand > I_pad or I_pad % cand != 0:
            continue
        if _weight_block_bytes(cand, H_pad, bpe) <= int(0.6 * budget):
            return cand
    return 128  # always divides I_pad (which is 128-aligned)


def _pick_t_tile(T, i_tile, H_pad, E_pad, bpe, vmem_cap):
    budget = int(0.75 * vmem_cap)
    w_bytes = _weight_block_bytes(i_tile, H_pad, bpe)
    per_tok = _per_token_bytes(i_tile, H_pad, E_pad, bpe)
    avail = budget - w_bytes
    t_cap = 512 if vmem_cap >= (96 << 20) else 256       # bigger tiles on 128 MiB parts
    t_fit = (avail // per_tok) // 16 * 16 if avail > per_tok * 16 else 16
    t_tile = max(16, min(t_cap, int(t_fit)))
    if t_tile >= 128:
        t_tile = (t_tile // 128) * 128                    # MXU-friendly M
    if T <= t_tile:
        two_core = vmem_cap < (96 << 20)                  # v7x heuristic (2 TCs/chip)
        if two_core and T > 32:
            t_tile = _round_up(-(-T // 2), 16)            # >=2 tiles -> use both cores
        else:
            t_tile = _round_up(max(T, 1), 16)             # bf16 sublane packing
    return int(t_tile)


def _footprint_bytes(t_tile, i_tile, H_pad, E_pad, bpe):
    return (_weight_block_bytes(i_tile, H_pad, bpe)
            + t_tile * _per_token_bytes(i_tile, H_pad, E_pad, bpe))


# ---------------------------------------------------------------------------
# Expert kernel.  grid = (n_token_tiles, num_experts, n_intermediate_tiles)
#   occ_ref/emap_ref/imap_ref : SMEM int32 (n_t*E,)  occupancy + DMA-elision maps
#   x_ref   : (Tt, Hp)       compute dtype   token tile (resident across e, i)
#   w13_ref : (Hp, 2*It)     compute dtype   fused up+gate tile of expert e
#   w2_ref  : (It, Hp)       compute dtype   down-proj tile of expert e
#   wgt_ref : (Tt, Ep)       f32             dense combine weights, lane-dense
#   out_ref : (Tt, Hp)       f32             accumulator (revisited across e, i)
#   wcol_ref: (Tt, 1)        f32 scratch     per-(t,e) combine column
# ---------------------------------------------------------------------------
def moe_expert_kernel(occ_ref, emap_ref, imap_ref,
                      x_ref, w13_ref, w2_ref, wgt_ref,
                      out_ref, wcol_ref, *, i_tile):
    t = pl.program_id(0)
    e = pl.program_id(1)
    i = pl.program_id(2)
    num_e = pl.num_programs(1)

    # Output block is revisited across (e, i): zero on first visit, then
    # accumulate in f32 directly into out_ref.
    @pl.when((e == 0) & (i == 0))
    def _init():
        out_ref[...] = jnp.zeros_like(out_ref)

    # Block-sparse skip: if no token in this tile selected expert e, the
    # combine weight is identically zero -> skip compute (the index_maps also
    # elide the weight DMA for these steps).
    @pl.when(occ_ref[t * num_e + e] > 0)
    def _compute():
        # Combine-weight column for expert e: compute once per (t, e) (i == 0),
        # reuse across the i reduction from VMEM scratch.
        @pl.when(i == 0)
        def _select_combine_col():
            wv = wgt_ref[...]                                            # (Tt, Ep)
            lane = jax.lax.broadcasted_iota(jnp.int32, wv.shape, 1)
            wcol_ref[...] = jnp.sum(jnp.where(lane == e, wv, 0.0),
                                    axis=1, keepdims=True)               # (Tt, 1)

        x = x_ref[...]                                                   # (Tt, Hp)
        h13 = jnp.dot(x, w13_ref[...],
                      preferred_element_type=jnp.float32)                # (Tt, 2*It)
        h1 = h13[:, :i_tile]
        h3 = h13[:, i_tile:]
        hidden = (h1 * jax.nn.sigmoid(h1)) * h3                          # SwiGLU, f32
        hidden = hidden * wcol_ref[...]                                  # scale on (Tt,It)
        w2v = w2_ref[...]                                                # (It, Hp)
        out_ref[...] += jnp.dot(hidden.astype(w2v.dtype), w2v,
                                preferred_element_type=jnp.float32)      # partial over I


# ---------------------------------------------------------------------------
# One-time parameter preparation (pad + cast + fuse w1/w3).  Hoisted out of
# the per-call forward so the f32->bf16 weight rewrite never hits HBM twice.
# ---------------------------------------------------------------------------
def prepare_moe_params(gate_w, w1, w3, w2, *, compute_dtype=jnp.bfloat16, i_tile=None):
    E, H, I = w1.shape
    H_pad = _round_up(H, 128)
    I_pad = _round_up(I, 128)
    cdt = compute_dtype
    bpe = jnp.dtype(cdt).itemsize
    vmem_cap = _vmem_capacity_bytes()
    if i_tile is None:
        i_tile = _pick_i_tile(I_pad, H_pad, bpe, vmem_cap)
    n_i = I_pad // i_tile

    def pad_cast(w, rows, cols):
        w = w.astype(cdt)
        if w.shape[1] == rows and w.shape[2] == cols:
            return w
        return jnp.zeros((E, rows, cols), cdt).at[:, :w.shape[1], :w.shape[2]].set(w)

    w1_p = pad_cast(w1, H_pad, I_pad)
    w3_p = pad_cast(w3, H_pad, I_pad)
    w2_p = pad_cast(w2, I_pad, H_pad)

    # Fuse w1/w3, interleaved per i-tile: block i of width 2*i_tile along the
    # last axis holds [w1 tile i | w3 tile i] -> one DMA stream, one matmul.
    w13_p = jnp.stack(
        [w1_p.reshape(E, H_pad, n_i, i_tile),
         w3_p.reshape(E, H_pad, n_i, i_tile)], axis=3
    ).reshape(E, H_pad, 2 * I_pad)

    return dict(gate_w=gate_w, w13=w13_p, w2=w2_p,
                E=E, H=H, I=I, H_pad=H_pad, I_pad=I_pad,
                i_tile=int(i_tile), n_i=int(n_i),
                compute_dtype=cdt, vmem_cap=int(vmem_cap))


# ---------------------------------------------------------------------------
# Forward pass (matches TopKMoELayer.forward semantics).
# ---------------------------------------------------------------------------
def topk_moe_forward(x, params, top_k):
    B, S, H = x.shape
    E = params["E"]
    H_pad, I_pad = params["H_pad"], params["I_pad"]
    i_tile, n_i = params["i_tile"], params["n_i"]
    cdt = params["compute_dtype"]
    bpe = jnp.dtype(cdt).itemsize
    vmem_cap = params["vmem_cap"]
    E_pad = _round_up(E, 128)
    T = B * S
    x2 = x.reshape(T, H)

    # ---- router: tiny (T,H)@(H,E) matmul + softmax/top-k glue -> XLA --------
    logits = x2.astype(jnp.float32) @ params["gate_w"].astype(jnp.float32)   # (T, E)
    probs = jax.nn.softmax(logits, axis=1)
    topk_w, topk_idx = jax.lax.top_k(probs, top_k)
    one_hot = jax.nn.one_hot(topk_idx, E, dtype=jnp.float32)                 # (T, K, E)
    expert_mask = jnp.sum(one_hot, axis=1)                                   # (T, E)
    aux_loss = jnp.sum(jnp.mean(expert_mask, 0) * jnp.mean(probs, 0)) * E
    nw = topk_w / (jnp.sum(topk_w, -1, keepdims=True) + 1e-6)
    dense_w = jnp.sum(one_hot * nw[..., None], axis=1)                       # (T, E)

    # ---- per-call tiles (weights/i_tile are fixed at prepare time) ----------
    t_tile = _pick_t_tile(T, i_tile, H_pad, E_pad, bpe, vmem_cap)
    T_pad = _round_up(T, t_tile)
    n_t = T_pad // t_tile

    x_p = jnp.zeros((T_pad, H_pad), cdt).at[:T, :H].set(x2.astype(cdt))
    wgt_p = jnp.zeros((T_pad, E_pad), jnp.float32).at[:T, :E].set(dense_w)

    # Per-(token-tile, expert) occupancy + DMA-elision remap tables:
    # for a skipped (t,e) group, w13/w2 index_maps return the last actually
    # fetched (expert, i) block so Pallas elides the weight copy entirely.
    mask_p = jnp.zeros((T_pad, E), jnp.float32).at[:T].set(expert_mask)
    occ2d = (mask_p.reshape(n_t, t_tile, E).sum(axis=1) > 0).astype(jnp.int32)
    occ_flat = occ2d.reshape(-1)                                             # (n_t*E,)

    e_ids = jnp.tile(jnp.arange(E, dtype=jnp.int32), n_t)
    last_i_val = jnp.array(n_i - 1, jnp.int32)

    def scan_fn(carry, oe):
        last_e, last_i = carry
        o, e_id = oe
        out = (last_e, last_i)                       # value used when this group is skipped
        new_e = jnp.where(o > 0, e_id, last_e)
        new_i = jnp.where(o > 0, last_i_val, last_i)
        return (new_e, new_i), out

    _, (emap, imap) = jax.lax.scan(
        scan_fn, (jnp.array(0, jnp.int32), jnp.array(0, jnp.int32)),
        (occ_flat, e_ids))

    # ---- BlockSpecs ----------------------------------------------------------
    def x_map(t, e, i, occ, em, im):
        return (t, 0)

    def w13_map(t, e, i, occ, em, im):
        g = t * E + e
        sel = occ[g]
        return (sel * e + (1 - sel) * em[g], 0, sel * i + (1 - sel) * im[g])

    def w2_map(t, e, i, occ, em, im):
        g = t * E + e
        sel = occ[g]
        return (sel * e + (1 - sel) * em[g], sel * i + (1 - sel) * im[g], 0)

    def wgt_map(t, e, i, occ, em, im):
        return (t, 0)

    def out_map(t, e, i, occ, em, im):
        return (t, 0)

    foot = _footprint_bytes(t_tile, i_tile, H_pad, E_pad, bpe)
    vmem_limit = int(min(max(2 * foot, 32 << 20), int(0.9 * vmem_cap)))

    kernel = functools.partial(moe_expert_kernel, i_tile=i_tile)

    out_p = pl.pallas_call(
        kernel,
        out_shape=jax.ShapeDtypeStruct((T_pad, H_pad), jnp.float32),
        grid_spec=pltpu.PrefetchScalarGridSpec(
            num_scalar_prefetch=3,
            grid=(n_t, E, n_i),
            in_specs=[
                pl.BlockSpec((t_tile, H_pad), x_map),
                pl.BlockSpec((pl.Squeezed(), H_pad, 2 * i_tile), w13_map),
                pl.BlockSpec((pl.Squeezed(), i_tile, H_pad), w2_map),
                pl.BlockSpec((t_tile, E_pad), wgt_map),
            ],
            out_specs=pl.BlockSpec((t_tile, H_pad), out_map),
            scratch_shapes=[pltpu.VMEM((t_tile, 1), jnp.float32)],
        ),
        compiler_params=pltpu.CompilerParams(
            dimension_semantics=("parallel", "arbitrary", "arbitrary"),
            vmem_limit_bytes=vmem_limit,
        ),
    )(occ_flat, emap, imap, x_p, params["w13"], params["w2"], wgt_p)

    out = out_p[:T, :H].astype(x.dtype).reshape(B, S, H)
    return out, aux_loss


def topk_moe_forward_raw(x, gate_w, w1, w3, w2, top_k, *, compute_dtype=jnp.bfloat16):
    params = prepare_moe_params(gate_w, w1, w3, w2, compute_dtype=compute_dtype)
    return topk_moe_forward(x, params, top_k)


# ---------------------------------------------------------------------------
# Pure-JAX reference (mirrors the PyTorch module semantics, f32 throughout).
# ---------------------------------------------------------------------------
def reference_forward(x, gate_w, w1, w3, w2, top_k):
    B, S, H = x.shape
    E = gate_w.shape[1]
    x2 = x.reshape(-1, H)
    logits = x2 @ gate_w
    probs = jax.nn.softmax(logits.astype(jnp.float32), axis=1)
    topk_w, topk_idx = jax.lax.top_k(probs, top_k)
    expert_mask = jnp.sum(jax.nn.one_hot(topk_idx, E, dtype=jnp.float32), axis=1)
    aux = jnp.sum(jnp.mean(expert_mask, 0) * jnp.mean(probs, 0)) * E
    nw = topk_w / (jnp.sum(topk_w, -1, keepdims=True) + 1e-6)

    def ffn(e, xin):
        h = jax.nn.silu(xin @ w1[e]) * (xin @ w3[e])
        return h @ w2[e]

    all_out = jnp.stack([ffn(e, x2) for e in range(E)], axis=1)           # (T, E, H)
    gathered = jnp.take_along_axis(all_out, topk_idx[..., None], axis=1)  # (T, K, H)
    out = jnp.sum(gathered * nw[..., None], axis=1)
    return out.reshape(B, S, H), aux


# ---------------------------------------------------------------------------
if __name__ == "__main__":
    B, S, H = 2, 8, 32          # batch, seq, hidden_size
    E, K, I = 4, 2, 64          # num_experts, top_k, intermediate_size

    key = jax.random.PRNGKey(0)
    kx, kg, k1, k2, k3 = jax.random.split(key, 5)

    x = jax.random.normal(kx, (B, S, H), dtype=jnp.float32)
    gate_w = jax.random.normal(kg, (H, E), dtype=jnp.float32) * 0.1   # gate.weight.T
    w1 = jax.random.normal(k1, (E, H, I), dtype=jnp.float32) * 0.1    # experts[e].w1.weight.T
    w3 = jax.random.normal(k3, (E, H, I), dtype=jnp.float32) * 0.1    # experts[e].w3.weight.T
    w2 = jax.random.normal(k2, (E, I, H), dtype=jnp.float32) * 0.1    # experts[e].w2.weight.T

    ref_out, ref_aux = reference_forward(x, gate_w, w1, w3, w2, K)

    # Default path: prepared (padded/cast/fused) bf16 params + f32 accumulation.
    params = prepare_moe_params(gate_w, w1, w3, w2, compute_dtype=jnp.bfloat16)
    out, aux = topk_moe_forward(x, params, K)
    out = jax.block_until_ready(out)
    aux = jax.block_until_ready(aux)
    assert out.shape == (B, S, H)
    assert jnp.allclose(out, ref_out, atol=3e-2, rtol=3e-2), float(
        jnp.max(jnp.abs(out - ref_out)))
    assert jnp.allclose(aux, ref_aux, atol=1e-5, rtol=1e-5)

    # Sanity path: f32 compute dtype should match the reference tightly.
    out32, _ = topk_moe_forward_raw(x, gate_w, w1, w3, w2, K, compute_dtype=jnp.float32)
    out32 = jax.block_until_ready(out32)
    assert jnp.allclose(out32, ref_out, atol=1e-4, rtol=1e-4), float(
        jnp.max(jnp.abs(out32 - ref_out)))

    print("KERNEL_OK")
</pallas_src>

<mosaic_0001>
module attributes {stable_mosaic.version = 11 : i64} {
  func.func @moe_expert_kernel(%arg0: i32, %arg1: i32, %arg2: i32, %arg3: memref<4xi32, #tpu.memory_space<smem>>, %arg4: memref<4xi32, #tpu.memory_space<smem>>, %arg5: memref<4xi32, #tpu.memory_space<smem>>, %arg6: memref<16x128xbf16, #tpu.memory_space<vmem>>, %arg7: memref<1x128x256xbf16, #tpu.memory_space<vmem>>, %arg8: memref<1x128x128xbf16, #tpu.memory_space<vmem>>, %arg9: memref<16x128xf32, #tpu.memory_space<vmem>>, %arg10: memref<16x128xf32, #tpu.memory_space<vmem>>, %arg11: memref<16x1xf32, #tpu.memory_space<vmem>>) attributes {dimension_semantics = [#tpu.dimension_semantics<parallel>, #tpu.dimension_semantics<arbitrary>, #tpu.dimension_semantics<arbitrary>], iteration_bounds = array<i64: 1, 4, 1>, scalar_prefetch = 3 : i64, scratch_operands = 1 : i64, tpu.core_type = #tpu.core_type<tc>, window_params = [{transform_indices = @transform_0, window_bounds = array<i64: 16, 128>}, {transform_indices = @transform_1, window_bounds = array<i64: 1, 128, 256>}, {transform_indices = @transform_2, window_bounds = array<i64: 1, 128, 128>}, {transform_indices = @transform_3, window_bounds = array<i64: 16, 128>}, {transform_indices = @transform_4, window_bounds = array<i64: 16, 128>}]} {
    %c0_i32 = arith.constant 0 : i32
    %0 = arith.cmpi eq, %arg1, %c0_i32 : i32
    %c0_i32_0 = arith.constant 0 : i32
    %1 = arith.cmpi eq, %arg2, %c0_i32_0 : i32
    %2 = arith.andi %0, %1 : i1
    %3 = arith.extui %2 : i1 to i32
    %c0_i32_1 = arith.constant 0 : i32
    %4 = arith.cmpi ne, %3, %c0_i32_1 : i32
    scf.if %4 {
      %cst = arith.constant 0.000000e+00 : f32
      %12 = vector.broadcast %cst : f32 to vector<16x128xf32>
      %c0 = arith.constant 0 : index
      %c0_4 = arith.constant 0 : index
      %13 = vector.load %arg10[%c0, %c0_4] : memref<16x128xf32, #tpu.memory_space<vmem>>, vector<16x128xf32>
      tpu.vector_store %arg10[%c0, %c0_4], %12 {strides = array<i32>} : memref<16x128xf32, #tpu.memory_space<vmem>>, vector<16x128xf32>,
    } else {
    }
    %c4_i32 = arith.constant 4 : i32
    %5 = arith.muli %arg0, %c4_i32 : i32
    %6 = arith.addi %5, %arg1 : i32
    %7 = arith.index_cast %6 : i32 to index
    %8 = memref.load %arg3[%7] : memref<4xi32, #tpu.memory_space<smem>>
    %c0_i32_2 = arith.constant 0 : i32
    %9 = arith.cmpi sgt, %8, %c0_i32_2 : i32
    %10 = arith.extui %9 : i1 to i32
    %c0_i32_3 = arith.constant 0 : i32
    %11 = arith.cmpi ne, %10, %c0_i32_3 : i32
    scf.if %11 {
      %c0_i32_4 = arith.constant 0 : i32
      %12 = arith.cmpi eq, %arg2, %c0_i32_4 : i32
      %13 = arith.extui %12 : i1 to i32
      %c0_i32_5 = arith.constant 0 : i32
      %14 = arith.cmpi ne, %13, %c0_i32_5 : i32
      scf.if %14 {
        %c0_21 = arith.constant 0 : index
        %c0_22 = arith.constant 0 : index
        %38 = vector.load %arg9[%c0_21, %c0_22] : memref<16x128xf32, #tpu.memory_space<vmem>>, vector<16x128xf32>
        %39 = tpu.iota {dimensions = array<i32: 1>} : vector<16x128xi32>
        %40 = vector.broadcast %arg1 : i32 to vector<16x128xi32>
        %41 = arith.cmpi eq, %39, %40 : vector<16x128xi32>
        %cst_23 = arith.constant 0.000000e+00 : f32
        %42 = vector.broadcast %cst_23 : f32 to vector<16x128xf32>
        %43 = arith.select %41, %38, %42 : vector<16x128xi1>, vector<16x128xf32>
        %cst_24 = arith.constant dense<0.000000e+00> : vector<16xf32>
        %44 = vector.multi_reduction <add>, %43, %cst_24 [1] : vector<16x128xf32> to vector<16xf32>
        %45 = vector.shape_cast %44 : vector<16xf32> to vector<16x1xf32>
        %c0_25 = arith.constant 0 : index
        %c0_26 = arith.constant 0 : index
        %46 = vector.load %arg11[%c0_25, %c0_26] : memref<16x1xf32, #tpu.memory_space<vmem>>, vector<16x1xf32>
        tpu.vector_store %arg11[%c0_25, %c0_26], %45 {strides = array<i32>} : memref<16x1xf32, #tpu.memory_space<vmem>>, vector<16x1xf32>,
      } else {
      }
      %c0 = arith.constant 0 : index
      %c0_6 = arith.constant 0 : index
      %15 = vector.load %arg6[%c0, %c0_6] : memref<16x128xbf16, #tpu.memory_space<vmem>>, vector<16x128xbf16>
      %c0_7 = arith.constant 0 : index
      %c0_8 = arith.constant 0 : index
      %c0_9 = arith.constant 0 : index
      %16 = vector.load %arg7[%c0_7, %c0_8, %c0_9] : memref<1x128x256xbf16, #tpu.memory_space<vmem>>, vector<1x128x256xbf16>
      %17 = vector.shape_cast %16 : vector<1x128x256xbf16> to vector<128x256xbf16>
      %cst = arith.constant dense<0.000000e+00> : vector<16x256xf32>
      %18 = tpu.matmul %15, %17, %cst {dimension_numbers = #tpu.dot_dimension_numbers<[1], [0], [0], [1], [0, 0, 1, 1], [], []>} : vector<16x128xbf16>, vector<128x256xbf16>, vector<16x256xf32> -> vector<16x256xf32>
      %19 = vector.extract_strided_slice %18 {offsets = [0, 0], sizes = [16, 128], strides = [1, 1]} : vector<16x256xf32> to vector<16x128xf32>
      %20 = vector.extract_strided_slice %18 {offsets = [0, 128], sizes = [16, 128], strides = [1, 1]} : vector<16x256xf32> to vector<16x128xf32>
      %21 = arith.negf %19 : vector<16x128xf32>
      %22 = math.exp %21 : vector<16x128xf32>
      %cst_10 = arith.constant 1.000000e+00 : f32
      %23 = vector.broadcast %cst_10 : f32 to vector<16x128xf32>
      %24 = arith.addf %23, %22 : vector<16x128xf32>
      %25 = arith.divf %23, %24 : vector<16x128xf32>
      %26 = arith.mulf %19, %25 : vector<16x128xf32>
      %27 = arith.mulf %26, %20 : vector<16x128xf32>
      %c0_11 = arith.constant 0 : index
      %c0_12 = arith.constant 0 : index
      %28 = vector.load %arg11[%c0_11, %c0_12] : memref<16x1xf32, #tpu.memory_space<vmem>>, vector<16x1xf32>
      %29 = vector.broadcast %28 : vector<16x1xf32> to vector<16x128xf32>
      %30 = arith.mulf %27, %29 : vector<16x128xf32>
      %c0_13 = arith.constant 0 : index
      %c0_14 = arith.constant 0 : index
      %c0_15 = arith.constant 0 : index
      %31 = vector.load %arg8[%c0_13, %c0_14, %c0_15] : memref<1x128x128xbf16, #tpu.memory_space<vmem>>, vector<1x128x128xbf16>
      %32 = vector.shape_cast %31 : vector<1x128x128xbf16> to vector<128x128xbf16>
      %c0_16 = arith.constant 0 : index
      %c0_17 = arith.constant 0 : index
      %33 = vector.load %arg10[%c0_16, %c0_17] : memref<16x128xf32, #tpu.memory_space<vmem>>, vector<16x128xf32>
      %34 = arith.truncf %30 : vector<16x128xf32> to vector<16x128xbf16>
      %cst_18 = arith.constant dense<0.000000e+00> : vector<16x128xf32>
      %35 = tpu.matmul %34, %32, %cst_18 {dimension_numbers = #tpu.dot_dimension_numbers<[1], [0], [0], [1], [0, 0, 1, 1], [], []>} : vector<16x128xbf16>, vector<128x128xbf16>, vector<16x128xf32> -> vector<16x128xf32>
      %36 = arith.addf %33, %35 : vector<16x128xf32>
      %c0_19 = arith.constant 0 : index
      %c0_20 = arith.constant 0 : index
      %37 = vector.load %arg10[%c0_19, %c0_20] : memref<16x128xf32, #tpu.memory_space<vmem>>, vector<16x128xf32>
      tpu.vector_store %arg10[%c0_19, %c0_20], %36 {strides = array<i32>} : memref<16x128xf32, #tpu.memory_space<vmem>>, vector<16x128xf32>,
    } else {
    }
    return
  }
  func.func @transform_0(%arg0: i32, %arg1: i32, %arg2: i32, %arg3: memref<4xi32, #tpu.memory_space<smem>>, %arg4: memref<4xi32, #tpu.memory_space<smem>>, %arg5: memref<4xi32, #tpu.memory_space<smem>>) -> (i32, i32) {
    %c0_i32 = arith.constant 0 : i32
    %c0_i32_0 = arith.constant 0 : i32
    return %arg0, %c0_i32 : i32, i32
  }
  func.func @transform_1(%arg0: i32, %arg1: i32, %arg2: i32, %arg3: memref<4xi32, #tpu.memory_space<smem>>, %arg4: memref<4xi32, #tpu.memory_space<smem>>, %arg5: memref<4xi32, #tpu.memory_space<smem>>) -> (i32, i32, i32) {
    %c4_i32 = arith.constant 4 : i32
    %0 = arith.muli %arg0, %c4_i32 : i32
    %1 = arith.addi %0, %arg1 : i32
    %2 = arith.index_cast %1 : i32 to index
    %3 = memref.load %arg3[%2] : memref<4xi32, #tpu.memory_space<smem>>
    %4 = arith.muli %3, %arg1 : i32
    %c1_i32 = arith.constant 1 : i32
    %5 = arith.subi %c1_i32, %3 : i32
    %6 = arith.index_cast %1 : i32 to index
    %7 = memref.load %arg4[%6] : memref<4xi32, #tpu.memory_space<smem>>
    %8 = arith.muli %5, %7 : i32
    %9 = arith.addi %4, %8 : i32
    %10 = arith.muli %3, %arg2 : i32
    %c1_i32_0 = arith.constant 1 : i32
    %11 = arith.subi %c1_i32_0, %3 : i32
    %12 = arith.index_cast %1 : i32 to index
    %13 = memref.load %arg5[%12] : memref<4xi32, #tpu.memory_space<smem>>
    %14 = arith.muli %11, %13 : i32
    %15 = arith.addi %10, %14 : i32
    %c0_i32 = arith.constant 0 : i32
    %c0_i32_1 = arith.constant 0 : i32
    return %9, %c0_i32, %15 : i32, i32, i32
  }
  func.func @transform_2(%arg0: i32, %arg1: i32, %arg2: i32, %arg3: memref<4xi32, #tpu.memory_space<smem>>, %arg4: memref<4xi32, #tpu.memory_space<smem>>, %arg5: memref<4xi32, #tpu.memory_space<smem>>) -> (i32, i32, i32) {
    %c4_i32 = arith.constant 4 : i32
    %0 = arith.muli %arg0, %c4_i32 : i32
    %1 = arith.addi %0, %arg1 : i32
    %2 = arith.index_cast %1 : i32 to index
    %3 = memref.load %arg3[%2] : memref<4xi32, #tpu.memory_space<smem>>
    %4 = arith.muli %3, %arg1 : i32
    %c1_i32 = arith.constant 1 : i32
    %5 = arith.subi %c1_i32, %3 : i32
    %6 = arith.index_cast %1 : i32 to index
    %7 = memref.load %arg4[%6] : memref<4xi32, #tpu.memory_space<smem>>
    %8 = arith.muli %5, %7 : i32
    %9 = arith.addi %4, %8 : i32
    %10 = arith.muli %3, %arg2 : i32
    %c1_i32_0 = arith.constant 1 : i32
    %11 = arith.subi %c1_i32_0, %3 : i32
    %12 = arith.index_cast %1 : i32 to index
    %13 = memref.load %arg5[%12] : memref<4xi32, #tpu.memory_space<smem>>
    %14 = arith.muli %11, %13 : i32
    %15 = arith.addi %10, %14 : i32
    %c0_i32 = arith.constant 0 : i32
    %c0_i32_1 = arith.constant 0 : i32
    return %9, %15, %c0_i32 : i32, i32, i32
  }
  func.func @transform_3(%arg0: i32, %arg1: i32, %arg2: i32, %arg3: memref<4xi32, #tpu.memory_space<smem>>, %arg4: memref<4xi32, #tpu.memory_space<smem>>, %arg5: memref<4xi32, #tpu.memory_space<smem>>) -> (i32, i32) {
    %c0_i32 = arith.constant 0 : i32
    %c0_i32_0 = arith.constant 0 : i32
    return %arg0, %c0_i32 : i32, i32
  }
  func.func @transform_4(%arg0: i32, %arg1: i32, %arg2: i32, %arg3: memref<4xi32, #tpu.memory_space<smem>>, %arg4: memref<4xi32, #tpu.memory_space<smem>>, %arg5: memref<4xi32, #tpu.memory_space<smem>>) -> (i32, i32) {
    %c0_i32 = arith.constant 0 : i32
    %c0_i32_0 = arith.constant 0 : i32
    return %arg0, %c0_i32 : i32, i32
  }
}

</mosaic_0001>

<llo_original>
// kernel: tpu_custom_call.1
$region0: #{tpu_custom_call.1}
  #allocation0 [shape = 'u32[]', space=smem, size = 0x4, offset = 0x4, fixed_abs, tag = 'smem constant byte address 0x4 - core index']
  #allocation1 [shape = 'u32[144,128]{1,0:T(1,128)}', space=vmem, size = 0x12000, scoped, tag = 'internal scratch']
  #allocation2 [shape = 'f32[16,1]{1,0:T(8,128)}', space=vmem, size = 0x2000, scoped, tag = 'scratch operand']
  #allocation3 [shape = 's32[1]{0}', space=sflag, size = 0x4, scoped, tag = 'scoped memory for tpu_custom_call.1']
  #allocation4 [shape = 'u8[512]{0}', space=smem, size = 0x200, scoped, tag = 'prefetched SMEM operand 0']
  #allocation5 [shape = 'u8[512]{0}', space=smem, size = 0x200, scoped, tag = 'prefetched SMEM operand 1']
  #allocation6 [shape = 'u8[512]{0}', space=smem, size = 0x200, scoped, tag = 'prefetched SMEM operand 2']
  %s0 = inlined_call_operand.hbm [shape: s32[4], index: 0, kind: input, shape index: {}]
  %s1 = inlined_call_operand.vmem [shape: s32[4], index: 1, kind: input, shape index: {}]
  %s2 = inlined_call_operand.vmem [shape: s32[4], index: 2, kind: input, shape index: {}]
  %s3 = inlined_call_operand.hbm [shape: bf16[16,128], index: 3, kind: input, shape index: {}]
  %s4 = inlined_call_operand.hbm [shape: bf16[4,128,256], index: 4, kind: input, shape index: {}]
  %s5 = inlined_call_operand.hbm [shape: bf16[4,128,128], index: 5, kind: input, shape index: {}]
  %s6 = inlined_call_operand.vmem [shape: f32[16,128], index: 6, kind: input, shape index: {}]
  %s7 = inlined_call_operand.hbm [shape: f32[16,128], index: 7, kind: output, shape index: {}]
  %s8 = sld [smem:[#allocation0]]
  $region73: #{tpu_custom_call.1} parent=0
    _
  %s10 = ssub.s32 1, %s8
  %s11 = scalar_select 0, %s10, %s8
  %13 = dma.hbm_to_smem %s0, 16, [#allocation4], [#allocation3]
  %s14 = sshll.u32 %s1, 4
  %s15 = int_to_ptr.vmem [resolvable:$true] %s14
  %17 = dma.vmem_to_smem %s15, 16, [#allocation5], [#allocation3]
  %s18 = sshll.u32 %s2, 4
  %s19 = int_to_ptr.vmem [resolvable:$true] %s18
  %21 = dma.vmem_to_smem %s19, 16, [#allocation6], [#allocation3]
  %22 = dma.done [#allocation3], 48
  %23 = sfence
  $region1: #{tpu_custom_call.1} parent=0
    #allocation7 [shape = 'u8[4096]{0}', space=vmem, size = 0x1000, scoped, tag = 'input window, operand 3, single buffered']
    #allocation8 [shape = 's32[2]{0}', space=sflag, size = 0x8, scoped, tag = 'scoped memory for tpu_custom_call.1']
    #allocation9 [shape = 's32[2]{0}', space=sflag, size = 0x8, scoped, tag = 'scoped memory for tpu_custom_call.1']
    #allocation10 [shape = 'u8[131072]{0}', space=vmem, size = 0x20000, scoped, tag = 'input window, operand 4']
    #allocation11 [shape = 's32[2]{0}', space=sflag, size = 0x8, scoped, tag = 'scoped memory for tpu_custom_call.1']
    #allocation12 [shape = 'u8[65536]{0}', space=vmem, size = 0x10000, scoped, tag = 'input window, operand 5']
    #allocation13 [shape = 'u8[8192]{0}', space=vmem, size = 0x2000, scoped, tag = 'output window, operand 0, single buffered']
    %24 = vsyncpa [#allocation8], 0
    %25 = vsyncpa [#allocation11], 0
    %s26 = scalar_lea.sflag [#allocation11], 1
    %27 = vsyncpa %s26, 0
    %28 = vsyncpa [#allocation9], 0
    loop: start=0, step=1, limit=6
    $region2: #{tpu_custom_call.1} parent=1 // loop_pre_header
      _
    $region3: #{tpu_custom_call.1} parent=1 // loop_header
      %s30 = sphi 0, %s34
      %p31 = scmp.ge.s32.totalorder %s30, 6
      %s37 = sphi 0, %s56
      %s38 = sphi 0, %s52
      %s39 = sphi 0, %s48
      %s40 = sphi 0, %s37
      %s41 = sphi 0, %s38
      %s42 = sphi 0, %s39
      %s43 = sphi 0, %s40
      %s44 = sphi 0, %s41
      %s45 = sphi 0, %s42
      %s59 = sphi 0, %s61
      %s62 = sphi 0, %s59
      %s63 = sphi 0, %s62
      %s79 = sphi 0, %s63
      %s111 = sphi 0, %s113
      %s114 = sphi 0, %s111
      %s115 = sphi 0, %s114
      %s131 = sphi 0, %s115
      %s163 = sphi 0, %s165
      %s166 = sphi 0, %s163
      %s167 = sphi 0, %s166
      %s183 = sphi 0, %s167
      %s189 = sphi 0, %s191
      %s192 = sphi 0, %s189
      %s193 = sphi 0, %s192
      %s209 = sphi 0, %s193
      %s215 = sphi 0, %s217
      %s218 = sphi 0, %s215
      %s219 = sphi 0, %s218
      %s235 = sphi 0, %s219
    $region4: #{tpu_custom_call.1} parent=1 // loop_header_branch
      %33 = sbr.rel (%p31) target = $region8
    $region5: #{tpu_custom_call.1} parent=1 // loop_body
      %s35 = ssub.s32 %s30, 1
      %s36 = ssub.s32 %s30, 2
      %s46 = sadd.s32 1, %s39
      %p47 = scmp.ge.s32.totalorder %s46, 1
      %s48 = scalar_select %p47, 0, %s46
      %s49 = sadd.s32 1, %s38
      %s50 = scalar_select %p47, %s49, %s38
      %p51 = scmp.ge.s32.totalorder %s50, 4
      %s52 = scalar_select %p51, 0, %s50
      %s53 = sadd.s32 1, %s37
      %s54 = scalar_select %p51, %s53, %s37
      %p55 = scmp.ge.s32.totalorder %s54, 1
      %s56 = scalar_select %p55, 0, %s54
      %s57 = ssub.s32 %s37, %s56
      %p58 = scmp.eq.s32.totalorder %s57, 0
      %s60 = sadd.s32 %s59, 1
      %s61 = scalar_select %p58, %s59, %s60
      %p64 = pneg %p58
      %p65 = scmp.eq.s32.totalorder %s30, 3
      %p66 = por %p64, %p65
      %p67 = scmp.ne.s32.totalorder %s59, %s62
      %p68 = scmp.eq.s32.totalorder %s30, 0
      %p69 = por %p67, %p68
      %p70 = scmp.ne.s32.totalorder %s59, %s62
      %p71 = scmp.eq.s32.totalorder %s35, 3
      %p72 = por %p70, %p71
      %p73 = scmp.ne.s32.totalorder %s62, %s63
      %p74 = scmp.eq.s32.totalorder %s35, 0
      %p75 = por %p73, %p74
      %p76 = scmp.ne.s32.totalorder %s62, %s63
      %p77 = scmp.eq.s32.totalorder %s36, 3
      %p78 = por %p76, %p77
      %p80 = scmp.ne.s32.totalorder %s63, %s79
      %p81 = scmp.eq.s32.totalorder %s36, 0
      %p82 = por %p80, %p81
      %s83 = smul.u32 %s37, 4
      %s84 = sadd.s32 %s83, %s38
      %s85 = sld [smem:[#allocation4 + %s84]]
      %s86 = smul.u32 %s85, %s38
      %s87 = ssub.s32 1, %s85
      %s88 = sld [smem:[#allocation5 + %s84]]
      %s89 = smul.u32 %s87, %s88
      %s90 = sadd.s32 %s86, %s89
      %s91 = smul.u32 %s85, %s39
      %s92 = sld [smem:[#allocation6 + %s84]]
      %s93 = smul.u32 %s87, %s92
      %s94 = sadd.s32 %s91, %s93
      %s95 = smul.u32 %s56, 4
      %s96 = sadd.s32 %s95, %s52
      %s97 = sld [smem:[#allocation4 + %s96]]
      %s98 = smul.u32 %s97, %s52
      %s99 = ssub.s32 1, %s97
      %s100 = sld [smem:[#allocation5 + %s96]]
      %s101 = smul.u32 %s99, %s100
      %s102 = sadd.s32 %s98, %s101
      %s103 = smul.u32 %s97, %s48
      %s104 = sld [smem:[#allocation6 + %s96]]
      %s105 = smul.u32 %s99, %s104
      %s106 = sadd.s32 %s103, %s105
      %s107 = ssub.s32 %s90, %s102
      %s108 = ssub.s32 %s94, %s106
      %s109 = sor.u32 %s107, %s108
      %p110 = scmp.eq.s32.totalorder %s109, 0
      %s112 = sadd.s32 %s111, 1
      %s113 = scalar_select %p110, %s111, %s112
      %p116 = pneg %p110
      %p117 = scmp.eq.s32.totalorder %s30, 3
      %p118 = por %p116, %p117
      %p119 = scmp.ne.s32.totalorder %s111, %s114
      %p120 = scmp.eq.s32.totalorder %s30, 0
      %p121 = por %p119, %p120
      %p122 = scmp.ne.s32.totalorder %s111, %s114
      %p123 = scmp.eq.s32.totalorder %s35, 3
      %p124 = por %p122, %p123
      %p125 = scmp.ne.s32.totalorder %s114, %s115
      %p126 = scmp.eq.s32.totalorder %s35, 0
      %p127 = por %p125, %p126
      %p128 = scmp.ne.s32.totalorder %s114, %s115
      %p129 = scmp.eq.s32.totalorder %s36, 3
      %p130 = por %p128, %p129
      %p132 = scmp.ne.s32.totalorder %s115, %s131
      %p133 = scmp.eq.s32.totalorder %s36, 0
      %p134 = por %p132, %p133
      %s135 = smul.u32 %s37, 4
      %s136 = sadd.s32 %s135, %s38
      %s137 = sld [smem:[#allocation4 + %s136]]
      %s138 = smul.u32 %s137, %s38
      %s139 = ssub.s32 1, %s137
      %s140 = sld [smem:[#allocation5 + %s136]]
      %s141 = smul.u32 %s139, %s140
      %s142 = sadd.s32 %s138, %s141
      %s143 = smul.u32 %s137, %s39
      %s144 = sld [smem:[#allocation6 + %s136]]
      %s145 = smul.u32 %s139, %s144
      %s146 = sadd.s32 %s143, %s145
      %s147 = smul.u32 %s56, 4
      %s148 = sadd.s32 %s147, %s52
      %s149 = sld [smem:[#allocation4 + %s148]]
      %s150 = smul.u32 %s149, %s52
      %s151 = ssub.s32 1, %s149
      %s152 = sld [smem:[#allocation5 + %s148]]
      %s153 = smul.u32 %s151, %s152
      %s154 = sadd.s32 %s150, %s153
      %s155 = smul.u32 %s149, %s48
      %s156 = sld [smem:[#allocation6 + %s148]]
      %s157 = smul.u32 %s151, %s156
      %s158 = sadd.s32 %s155, %s157
      %s159 = ssub.s32 %s142, %s154
      %s160 = ssub.s32 %s146, %s158
      %s161 = sor.u32 %s159, %s160
      %p162 = scmp.eq.s32.totalorder %s161, 0
      %s164 = sadd.s32 %s163, 1
      %s165 = scalar_select %p162, %s163, %s164
      %p168 = pneg %p162
      %p169 = scmp.eq.s32.totalorder %s30, 3
      %p170 = por %p168, %p169
      %p171 = scmp.ne.s32.totalorder %s163, %s166
      %p172 = scmp.eq.s32.totalorder %s30, 0
      %p173 = por %p171, %p172
      %p174 = scmp.ne.s32.totalorder %s163, %s166
      %p175 = scmp.eq.s32.totalorder %s35, 3
      %p176 = por %p174, %p175
      %p177 = scmp.ne.s32.totalorder %s166, %s167
      %p178 = scmp.eq.s32.totalorder %s35, 0
      %p179 = por %p177, %p178
      %p180 = scmp.ne.s32.totalorder %s166, %s167
      %p181 = scmp.eq.s32.totalorder %s36, 3
      %p182 = por %p180, %p181
      %p184 = scmp.ne.s32.totalorder %s167, %s183
      %p185 = scmp.eq.s32.totalorder %s36, 0
      %p186 = por %p184, %p185
      %s187 = ssub.s32 %s37, %s56
      %p188 = scmp.eq.s32.totalorder %s187, 0
      %s190 = sadd.s32 %s189, 1
      %s191 = scalar_select %p188, %s189, %s190
      %p194 = pneg %p188
      %p195 = scmp.eq.s32.totalorder %s30, 3
      %p196 = por %p194, %p195
      %p197 = scmp.ne.s32.totalorder %s189, %s192
      %p198 = scmp.eq.s32.totalorder %s30, 0
      %p199 = por %p197, %p198
      %p200 = scmp.ne.s32.totalorder %s189, %s192
      %p201 = scmp.eq.s32.totalorder %s35, 3
      %p202 = por %p200, %p201
      %p203 = scmp.ne.s32.totalorder %s192, %s193
      %p204 = scmp.eq.s32.totalorder %s35, 0
      %p205 = por %p203, %p204
      %p206 = scmp.ne.s32.totalorder %s192, %s193
      %p207 = scmp.eq.s32.totalorder %s36, 3
      %p208 = por %p206, %p207
      %p210 = scmp.ne.s32.totalorder %s193, %s209
      %p211 = scmp.eq.s32.totalorder %s36, 0
      %p212 = por %p210, %p211
      %s213 = ssub.s32 %s37, %s56
      %p214 = scmp.eq.s32.totalorder %s213, 0
      %s216 = sadd.s32 %s215, 1
      %s217 = scalar_select %p214, %s215, %s216
      %p220 = pneg %p214
      %p221 = scmp.eq.s32.totalorder %s30, 3
      %p222 = por %p220, %p221
      %p223 = scmp.ne.s32.totalorder %s215, %s218
      %p224 = scmp.eq.s32.totalorder %s30, 0
      %p225 = por %p223, %p224
      %p226 = scmp.ne.s32.totalorder %s215, %s218
      %p227 = scmp.eq.s32.totalorder %s35, 3
      %p228 = por %p226, %p227
      %p229 = scmp.ne.s32.totalorder %s218, %s219
      %p230 = scmp.eq.s32.totalorder %s35, 0
      %p231 = por %p229, %p230
      %p232 = scmp.ne.s32.totalorder %s218, %s219
      %p233 = scmp.eq.s32.totalorder %s36, 3
      %p234 = por %p232, %p233
      %p236 = scmp.ne.s32.totalorder %s219, %s235
      %p237 = scmp.eq.s32.totalorder %s36, 0
      %p238 = por %p236, %p237
      %p239 = scmp.le.s32.totalorder 1, %s30
      %p240 = scmp.lt.s32.totalorder %s30, 5
      %p241 = pnand %p239, %p240
      %p242 = pneg %p241
      // Predicated region
      $region9: #{tpu_custom_call.1} parent=5 // pred_check
        _
      $region10: #{tpu_custom_call.1} parent=5 // pred_check_branch
        %244 = sbr.rel (%p241) target = $region12
      $region11: #{tpu_custom_call.1} parent=5 // pred_region
        %s245 = ssub.s32 %s30, 1
        // Predicated region
        $region13: #{tpu_custom_call.1} parent=11 // pred_check
          %p246 = pneg %p75
        $region14: #{tpu_custom_call.1} parent=11 // pred_check_branch
          %248 = sbr.rel (%p246) target = $region16
        $region15: #{tpu_custom_call.1} parent=11 // pred_region
          %s249 = smul.u32 2, %s40
          %s251 = ssub.s32 128, 128
          %252 = vsyncadd [#allocation8], %s251
          %s253 = smul.addr %s249, 64
          %s254 = scalar_lea.hbm %s3, %s253
          %s255 = sshll.u32 [#allocation7], 4
          %s256 = int_to_ptr.vmem [resolvable:$true] %s255
          %261 = dma.hbm_to_vmem [thread:$0]  %s254, 128, %s256, [#allocation8], 64, 64, 4
        $region16: #{tpu_custom_call.1} parent=11 // pred_fallthru
          _
        // Predicated region
        $region17: #{tpu_custom_call.1} parent=11 // pred_check
          %p262 = pneg %p205
        $region18: #{tpu_custom_call.1} parent=11 // pred_check_branch
          %264 = sbr.rel (%p262) target = $region20
        $region19: #{tpu_custom_call.1} parent=11 // pred_region
          %s265 = smul.u32 2, %s40
          %p266 = scmp.lt.s32.totalorder %s265, 1
          %s267 = scalar_select %p266, %s265, 1
          %s268 = smul.addr %s267, 8
          %s269 = scalar_lea.vmem %s6, %s268
          %s270 = smul.u32 2, %s40
        $region20: #{tpu_custom_call.1} parent=11 // pred_fallthru
          _
      $region12: #{tpu_custom_call.1} parent=5 // pred_fallthru
        _
      %p271 = scmp.lt.s32.totalorder %s30, 4
      // Predicated region
      $region21: #{tpu_custom_call.1} parent=5 // pred_check
        %p272 = pneg %p271
      $region22: #{tpu_custom_call.1} parent=5 // pred_check_branch
        %274 = sbr.rel (%p272) target = $region24
      $region23: #{tpu_custom_call.1} parent=5 // pred_region
        // Predicated region
        $region25: #{tpu_custom_call.1} parent=23 // pred_check
          %p275 = pneg %p121
        $region26: #{tpu_custom_call.1} parent=23 // pred_check_branch
          %277 = sbr.rel (%p275) target = $region28
        $region27: #{tpu_custom_call.1} parent=23 // pred_region
          %s278 = sand.u32 %s30, 1
          %s279 = scalar_lea.sflag [#allocation11], %s278
          %s280 = sand.u32 %s111, 1
          %s281 = smul.addr %s280, 128
          %s282 = scalar_lea.vmem [#allocation10], %s281
          %s283 = smul.u32 %s37, 4
          %s284 = sadd.s32 %s283, %s38
          %s285 = sld [smem:[#allocation4 + %s284]]
          %s286 = smul.u32 %s285, %s38
          %s287 = ssub.s32 1, %s285
          %s288 = sld [smem:[#allocation5 + %s284]]
          %s289 = smul.u32 %s287, %s288
          %s290 = sadd.s32 %s286, %s289
          %s291 = smul.u32 %s285, %s39
          %s292 = sld [smem:[#allocation6 + %s284]]
          %s293 = smul.u32 %s287, %s292
          %s294 = sadd.s32 %s291, %s293
          %s295 = smul.u32 2, %s294
          %s297 = ssub.s32 2048, 2048
          %298 = vsyncadd %s279, %s297
          %s299 = smul.addr %s290, 32
          %s300 = sadd.s32 %s295, %s299
          %s301 = smul.addr %s300, 64
          %s302 = scalar_lea.hbm %s4, %s301
          %s303 = sshll.u32 %s282, 4
          %s304 = int_to_ptr.vmem [resolvable:$true] %s303
          %309 = dma.hbm_to_vmem [thread:$0]  %s302, 2048, %s304, %s279, 128, 128, 8
        $region28: #{tpu_custom_call.1} parent=23 // pred_fallthru
          _
        // Predicated region
        $region29: #{tpu_custom_call.1} parent=23 // pred_check
          %p310 = pneg %p173
        $region30: #{tpu_custom_call.1} parent=23 // pred_check_branch
          %312 = sbr.rel (%p310) target = $region32
        $region31: #{tpu_custom_call.1} parent=23 // pred_region
          %s313 = sand.u32 %s30, 1
          %s314 = scalar_lea.sflag [#allocation11], %s313
          %s315 = sand.u32 %s163, 1
          %s316 = smul.addr %s315, 64
          %s317 = scalar_lea.vmem [#allocation12], %s316
          %s318 = smul.u32 %s37, 4
          %s319 = sadd.s32 %s318, %s38
          %s320 = sld [smem:[#allocation4 + %s319]]
          %s321 = smul.u32 %s320, %s38
          %s322 = ssub.s32 1, %s320
          %s323 = sld [smem:[#allocation5 + %s319]]
          %s324 = smul.u32 %s322, %s323
          %s325 = sadd.s32 %s321, %s324
          %s326 = smul.u32 %s320, %s39
          %s327 = sld [smem:[#allocation6 + %s319]]
          %s328 = smul.u32 %s322, %s327
          %s329 = sadd.s32 %s326, %s328
          %s330 = smul.u32 16, %s329
          %s332 = ssub.s32 1024, 1024
          %333 = vsyncadd %s314, %s332
          %s334 = smul.addr %s325, 16
          %s335 = sadd.s32 %s330, %s334
          %s336 = smul.addr %s335, 64
          %s337 = scalar_lea.hbm %s5, %s336
          %s338 = sshll.u32 %s317, 4
          %s339 = int_to_ptr.vmem [resolvable:$true] %s338
          %344 = dma.hbm_to_vmem [thread:$0]  %s337, 1024, %s339, %s314, 64, 64, 4
        $region32: #{tpu_custom_call.1} parent=23 // pred_fallthru
          _
      $region24: #{tpu_custom_call.1} parent=5 // pred_fallthru
        _
      %p345 = scmp.le.s32.totalorder 1, %s30
      %p346 = scmp.lt.s32.totalorder %s30, 5
      %p347 = pnand %p345, %p346
      %p348 = pneg %p347
      // Predicated region
      $region33: #{tpu_custom_call.1} parent=5 // pred_check
        _
      $region34: #{tpu_custom_call.1} parent=5 // pred_check_branch
        %350 = sbr.rel (%p347) target = $region36
      $region35: #{tpu_custom_call.1} parent=5 // pred_region
        %s351 = ssub.s32 %s30, 1
        // Predicated region
        $region37: #{tpu_custom_call.1} parent=35 // pred_check
          %p352 = pneg %p75
        $region38: #{tpu_custom_call.1} parent=35 // pred_check_branch
          %354 = sbr.rel (%p352) target = $region40
        $region39: #{tpu_custom_call.1} parent=35 // pred_region
          %355 = dma.done [#allocation8], 128
        $region40: #{tpu_custom_call.1} parent=35 // pred_fallthru
          _
        %s356 = sand.u32 %s35, 1
        %s357 = scalar_lea.sflag [#allocation11], %s356
        %s358 = sand.u32 %s114, 1
        %s359 = smul.addr %s358, 128
        %s360 = scalar_lea.vmem [#allocation10], %s359
        // Predicated region
        $region41: #{tpu_custom_call.1} parent=35 // pred_check
          %p361 = pneg %p127
        $region42: #{tpu_custom_call.1} parent=35 // pred_check_branch
          %363 = sbr.rel (%p361) target = $region44
        $region43: #{tpu_custom_call.1} parent=35 // pred_region
          %364 = dma.done %s357, 2048
        $region44: #{tpu_custom_call.1} parent=35 // pred_fallthru
          _
        %s365 = sand.u32 %s35, 1
        %s366 = scalar_lea.sflag [#allocation11], %s365
        %s367 = sand.u32 %s166, 1
        %s368 = smul.addr %s367, 64
        %s369 = scalar_lea.vmem [#allocation12], %s368
        // Predicated region
        $region45: #{tpu_custom_call.1} parent=35 // pred_check
          %p370 = pneg %p179
        $region46: #{tpu_custom_call.1} parent=35 // pred_check_branch
          %372 = sbr.rel (%p370) target = $region48
        $region47: #{tpu_custom_call.1} parent=35 // pred_region
          %373 = dma.done %s366, 1024
        $region48: #{tpu_custom_call.1} parent=35 // pred_fallthru
          _
        %p374 = pneg %p75
        %p375 = pneg %p72
        %s376 = sand.u32 %s35, 1
        %s377 = scalar_lea.sflag [#allocation11], %s376
        %s378 = sand.u32 %s114, 1
        %s379 = smul.addr %s378, 128
        %s380 = scalar_lea.vmem [#allocation10], %s379
        %p381 = pneg %p127
        %p382 = pneg %p124
        %s383 = sand.u32 %s35, 1
        %s384 = scalar_lea.sflag [#allocation11], %s383
        %s385 = sand.u32 %s166, 1
        %s386 = smul.addr %s385, 64
        %s387 = scalar_lea.vmem [#allocation12], %s386
        %p388 = pneg %p179
        %p389 = pneg %p176
        %s390 = smul.u32 2, %s40
        %p391 = scmp.lt.s32.totalorder %s390, 1
        %s392 = scalar_select %p391, %s390, 1
        %s393 = smul.addr %s392, 8
        %s394 = scalar_lea.vmem %s6, %s393
        %p395 = pneg %p205
        %p396 = pneg %p202
        %p397 = pneg %p231
        %p398 = pneg %p228
        %s399 = smul.u32 2, %s40
        %s400 = smul.u32 %s40, 4
        %s401 = sadd.s32 %s400, %s41
        %s402 = sld [smem:[#allocation4 + %s401]]
        %s403 = smul.u32 %s402, %s41
        %s404 = ssub.s32 1, %s402
        %s405 = sld [smem:[#allocation5 + %s401]]
        %s406 = smul.u32 %s404, %s405
        %s407 = sadd.s32 %s403, %s406
        %s408 = smul.u32 %s402, %s42
        %s409 = sld [smem:[#allocation6 + %s401]]
        %s410 = smul.u32 %s404, %s409
        %s411 = sadd.s32 %s408, %s410
        %s412 = smul.u32 2, %s411
        %s413 = smul.u32 %s40, 4
        %s414 = sadd.s32 %s413, %s41
        %s415 = sld [smem:[#allocation4 + %s414]]
        %s416 = smul.u32 %s415, %s41
        %s417 = ssub.s32 1, %s415
        %s418 = sld [smem:[#allocation5 + %s414]]
        %s419 = smul.u32 %s417, %s418
        %s420 = sadd.s32 %s416, %s419
        %s421 = smul.u32 %s415, %s42
        %s422 = sld [smem:[#allocation6 + %s414]]
        %s423 = smul.u32 %s417, %s422
        %s424 = sadd.s32 %s421, %s423
        %s425 = smul.u32 16, %s424
        %s426 = smul.u32 2, %s40
        %p427 = scmp.lt.s32.totalorder %s426, 1
        %s428 = scalar_select %p427, %s426, 1
        %s429 = smul.addr %s428, 8
        %s430 = scalar_lea.vmem %s6, %s429
        %s431 = smul.u32 2, %s40
        %s432 = smul.u32 2, %s40
        %p434 = scmp.eq.s32.totalorder %s41, 0
        %p435 = scmp.eq.s32.totalorder %s42, 0
        %p436 = pnand %p434, %p435
        %p437 = pneg %p436
        // Predicated region
        $region49: #{tpu_custom_call.1} parent=35 // pred_check
          _
        $region50: #{tpu_custom_call.1} parent=35 // pred_check_branch
          %439 = sbr.rel (%p436) target = $region52
        $region51: #{tpu_custom_call.1} parent=35 // pred_region
          %440 = vst [vmem:[#allocation13] sm:$0xff] 0.0
          %441 = vst [vmem:[#allocation13 + $0x8] sm:$0xff] 0.0
        $region52: #{tpu_custom_call.1} parent=35 // pred_fallthru
          _
        %s442 = smul.u32 %s40, 4
        %s443 = sadd.s32 %s442, %s41
        %s444 = sld [smem:[#allocation4 + %s443]]
        %p445 = scmp.gt.s32.totalorder %s444, 0
        // Predicated region
        $region53: #{tpu_custom_call.1} parent=35 // pred_check
          %p446 = pneg %p445
        $region54: #{tpu_custom_call.1} parent=35 // pred_check_branch
          %448 = sbr.rel (%p446) target = $region56
        $region55: #{tpu_custom_call.1} parent=35 // pred_region
          // Predicated region
          $region57: #{tpu_custom_call.1} parent=55 // pred_check
            %p449 = pneg %p435
          $region58: #{tpu_custom_call.1} parent=55 // pred_check_branch
            %451 = sbr.rel (%p449) target = $region60
          $region59: #{tpu_custom_call.1} parent=55 // pred_region
            %v452 = vld [vmem:[%s430] sm:$0xff]
            %v453 = vld [vmem:[%s430 + $0x8] sm:$0xff]
            %v454 = vlaneseq
            %v455 = vand.u32 %v454, 127
            %v456 = vstv %s41
            %vm457 = vcmp.eq.s32.totalorder %v455, %v456
            %v458 = vsel %vm457, %v452, 0.0
            %v459 = vsel %vm457, %v453, 0.0
            %460 = vadd.xlane.f32.xlu0 %v458
            %v461 = vpop.xlane.xlu0 %460
            %462 = vadd.xlane.f32.xlu0 %v459
            %v463 = vpop.xlane.xlu0 %462
            %vm464 = vcmask 7168
            %465 = vst.msk [vmem:[#allocation2] sm:$0xff] %vm464, %v461
            %466 = vst.msk [vmem:[#allocation2 + $0x8] sm:$0xff] %vm464, %v463
          $region60: #{tpu_custom_call.1} parent=55 // pred_fallthru
            _
          %v467 = vld [vmem:[#allocation7] sm:$0xf]
          %v468 = vld [vmem:[#allocation7 + $0x4] sm:$0xf]
          %v469 = vld [vmem:[%s360] sm:$0xff]
          %v470 = vld [vmem:[%s360 + $0x8] sm:$0xff]
          %v471 = vld [vmem:[%s360 + $0x10] sm:$0xff]
          %v472 = vld [vmem:[%s360 + $0x18] sm:$0xff]
          %v473 = vld [vmem:[%s360 + $0x20] sm:$0xff]
          %v474 = vld [vmem:[%s360 + $0x28] sm:$0xff]
          %v475 = vld [vmem:[%s360 + $0x30] sm:$0xff]
          %v476 = vld [vmem:[%s360 + $0x38] sm:$0xff]
          %v477 = vld [vmem:[%s360 + $0x40] sm:$0xff]
          %v478 = vld [vmem:[%s360 + $0x48] sm:$0xff]
          %v479 = vld [vmem:[%s360 + $0x50] sm:$0xff]
          %v480 = vld [vmem:[%s360 + $0x58] sm:$0xff]
          %v481 = vld [vmem:[%s360 + $0x60] sm:$0xff]
          %v482 = vld [vmem:[%s360 + $0x68] sm:$0xff]
          %v483 = vld [vmem:[%s360 + $0x70] sm:$0xff]
          %v484 = vld [vmem:[%s360 + $0x78] sm:$0xff]
          %v487 = vunpack.c.l.b16 %v467
          %v488 = vunpack.c.l.b16 %v468
          %v489 = vpack.c.b16 %v488, %v487
          %v507 = vunpack.c.l.b16 %v469
          %v508 = vunpack.c.h.b16 %v469
          %v509 = vunpack.c.l.b16 %v470
          %v510 = vunpack.c.h.b16 %v470
          %v511 = vunpack.c.l.b16 %v471
          %v512 = vunpack.c.h.b16 %v471
          %v513 = vunpack.c.l.b16 %v472
          %v514 = vunpack.c.h.b16 %v472
          %v515 = vunpack.c.l.b16 %v473
          %v516 = vunpack.c.h.b16 %v473
          %v517 = vunpack.c.l.b16 %v474
          %v518 = vunpack.c.h.b16 %v474
          %v519 = vunpack.c.l.b16 %v475
          %v520 = vunpack.c.h.b16 %v475
          %v521 = vunpack.c.l.b16 %v476
          %v522 = vunpack.c.h.b16 %v476
          %v523 = vunpack.c.l.b16 %v477
          %v524 = vunpack.c.h.b16 %v477
          %v525 = vunpack.c.l.b16 %v478
          %v526 = vunpack.c.h.b16 %v478
          %v527 = vunpack.c.l.b16 %v479
          %v528 = vunpack.c.h.b16 %v479
          %v529 = vunpack.c.l.b16 %v480
          %v530 = vunpack.c.h.b16 %v480
          %v531 = vunpack.c.l.b16 %v481
          %v532 = vunpack.c.h.b16 %v481
          %v533 = vunpack.c.l.b16 %v482
          %v534 = vunpack.c.h.b16 %v482
          %v535 = vunpack.c.l.b16 %v483
          %v536 = vunpack.c.h.b16 %v483
          %v537 = vunpack.c.l.b16 %v484
          %v538 = vunpack.c.h.b16 %v484
          %v539 = vpack.c.b16 %v509, %v507
          %v540 = vpack.c.b16 %v510, %v508
          %v541 = vpack.c.b16 %v513, %v511
          %v542 = vpack.c.b16 %v514, %v512
          %v543 = vpack.c.b16 %v517, %v515
          %v544 = vpack.c.b16 %v518, %v516
          %v545 = vpack.c.b16 %v521, %v519
          %v546 = vpack.c.b16 %v522, %v520
          %v547 = vpack.c.b16 %v525, %v523
          %v548 = vpack.c.b16 %v526, %v524
          %v549 = vpack.c.b16 %v529, %v527
          %v550 = vpack.c.b16 %v530, %v528
          %v551 = vpack.c.b16 %v533, %v531
          %v552 = vpack.c.b16 %v534, %v532
          %v553 = vpack.c.b16 %v537, %v535
          %v554 = vpack.c.b16 %v538, %v536
          %571 = vmatprep.subr.bf16.mxu0 %v540
          %572 = vmatpush1.bf16.msra.mxu0 %v539
          %573 = vmatprep.subr.bf16.mxu0 %v542
          %574 = vmatpush1.bf16.msra.mxu0 %v541
          %575 = vmatprep.subr.bf16.mxu0 %v544
          %576 = vmatpush1.bf16.msra.mxu0 %v543
          %577 = vmatprep.subr.bf16.mxu0 %v546
          %578 = vmatpush1.bf16.msra.mxu0 %v545
          %579 = vmatprep.subr.bf16.mxu0 %v548
          %580 = vmatpush1.bf16.msra.mxu0 %v547
          %581 = vmatprep.subr.bf16.mxu0 %v550
          %582 = vmatpush1.bf16.msra.mxu0 %v549
          %583 = vmatprep.subr.bf16.mxu0 %v552
          %584 = vmatpush1.bf16.msra.mxu0 %v551
          %585 = vmatprep.subr.bf16.mxu0 %v554
          %586 = vmatpush1.bf16.msra.mxu0 %v553
          %587 = vmatprep.subr.bf16.mxu0 0
          %588 = vmatpush1.bf16.msra.mxu0 0
          %589 = vmatprep.subr.bf16.mxu0 0
          %590 = vmatpush1.bf16.msra.mxu0 0
          %591 = vmatprep.subr.bf16.mxu0 0
          %592 = vmatpush1.bf16.msra.mxu0 0
          %593 = vmatprep.subr.bf16.mxu0 0
          %594 = vmatpush1.bf16.msra.mxu0 0
          %595 = vmatprep.subr.bf16.mxu0 0
          %596 = vmatpush1.bf16.msra.mxu0 0
          %597 = vmatprep.subr.bf16.mxu0 0
          %598 = vmatpush1.bf16.msra.mxu0 0
          %599 = vmatprep.subr.bf16.mxu0 0
          %600 = vmatpush1.bf16.msra.mxu0 0
          %601 = vmatprep.subr.bf16.mxu0 0
          %602 = vmatpush1.bf16.msra.mxu0 0
          %603 = vmatprep.mubr.bf16.mxu0 0
          %604 = vmatmul.mubr.bf16.gmra.mrb[0].mxu0 %v489
          %v605 = vpop.f32.mrb[0].mxu0
          %v606 = vadd.f32 0.0, %v605
          %v607 = vpop.f32.mrb[0].mxu0
          %v608 = vadd.f32 0.0, %v607
          %v609 = vpop.f32.mrb[0].mxu0
          %v610 = vadd.f32 0.0, %v609
          %v611 = vpop.f32.mrb[0].mxu0
          %v612 = vadd.f32 0.0, %v611
          %613 = vdwg.mxu0
          %v614 = vxor.u32 %v606, 2147483648
          %v615 = vxor.u32 %v610, 2147483648
          %v616 = vmul.f32 %v614, 1.442695
          %v617 = vpow.pop %v616
          %v618 = vmul.f32 %v615, 1.442695
          %v619 = vpow.pop %v618
          %v620 = vadd.f32 %v617, 1.0
          %v621 = vadd.f32 %v619, 1.0
          %v622 = vrcp.pop %v620
          %v623 = vmul.f32 1.0, %v622
          %v624 = vrcp.pop %v621
          %v625 = vmul.f32 1.0, %v624
          %v626 = vmul.f32 %v606, %v623
          %v627 = vmul.f32 %v610, %v625
          %v628 = vmul.f32 %v626, %v608
          %v629 = vmul.f32 %v627, %v612
          %v630 = vld [vmem:[#allocation2] sm:$0xff]
          %v631 = vld [vmem:[#allocation2 + $0x8] sm:$0xff]
          %633 = vset.pattern.permute.xlu0 0
          %634 = vperm.xlu0 %633, %v630
          %v635 = vpop.permute.xlu0 %634
          %638 = vset.pattern.permute.xlu0 0
          %639 = vperm.xlu0 %638, %v631
          %v640 = vpop.permute.xlu0 %639
          %v642 = vmul.f32 %v628, %v635
          %v643 = vmul.f32 %v629, %v640
          %v644 = vld [vmem:[%s369] sm:$0xf]
          %v645 = vld [vmem:[%s369 + $0x4] sm:$0xf]
          %v646 = vld [vmem:[%s369 + $0x8] sm:$0xf]
          %v647 = vld [vmem:[%s369 + $0xc] sm:$0xf]
          %v648 = vld [vmem:[%s369 + $0x10] sm:$0xf]
          %v649 = vld [vmem:[%s369 + $0x14] sm:$0xf]
          %v650 = vld [vmem:[%s369 + $0x18] sm:$0xf]
          %v651 = vld [vmem:[%s369 + $0x1c] sm:$0xf]
          %v652 = vld [vmem:[%s369 + $0x20] sm:$0xf]
          %v653 = vld [vmem:[%s369 + $0x24] sm:$0xf]
          %v654 = vld [vmem:[%s369 + $0x28] sm:$0xf]
          %v655 = vld [vmem:[%s369 + $0x2c] sm:$0xf]
          %v656 = vld [vmem:[%s369 + $0x30] sm:$0xf]
          %v657 = vld [vmem:[%s369 + $0x34] sm:$0xf]
          %v658 = vld [vmem:[%s369 + $0x38] sm:$0xf]
          %v659 = vld [vmem:[%s369 + $0x3c] sm:$0xf]
          %v660 = vld [vmem:[#allocation13] sm:$0xff]
          %v661 = vld [vmem:[#allocation13 + $0x8] sm:$0xff]
          %v662 = vpack.c.bf16 %v643, %v642
          %v679 = vunpack.c.l.b16 %v644
          %v680 = vunpack.c.l.b16 %v645
          %v681 = vunpack.c.l.b16 %v646
          %v682 = vunpack.c.l.b16 %v647
          %v683 = vunpack.c.l.b16 %v648
          %v684 = vunpack.c.l.b16 %v649
          %v685 = vunpack.c.l.b16 %v650
          %v686 = vunpack.c.l.b16 %v651
          %v687 = vunpack.c.l.b16 %v652
          %v688 = vunpack.c.l.b16 %v653
          %v689 = vunpack.c.l.b16 %v654
          %v690 = vunpack.c.l.b16 %v655
          %v691 = vunpack.c.l.b16 %v656
          %v692 = vunpack.c.l.b16 %v657
          %v693 = vunpack.c.l.b16 %v658
          %v694 = vunpack.c.l.b16 %v659
          %v695 = vpack.c.b16 %v680, %v679
          %v696 = vpack.c.b16 %v682, %v681
          %v697 = vpack.c.b16 %v684, %v683
          %v698 = vpack.c.b16 %v686, %v685
          %v699 = vpack.c.b16 %v688, %v687
          %v700 = vpack.c.b16 %v690, %v689
          %v701 = vpack.c.b16 %v692, %v691
          %v702 = vpack.c.b16 %v694, %v693
          %711 = vmatprep.subr.bf16.mxu0 0
          %712 = vmatpush1.bf16.msra.mxu0 %v695
          %713 = vmatprep.subr.bf16.mxu0 0
          %714 = vmatpush1.bf16.msra.mxu0 %v696
          %715 = vmatprep.subr.bf16.mxu0 0
          %716 = vmatpush1.bf16.msra.mxu0 %v697
          %717 = vmatprep.subr.bf16.mxu0 0
          %718 = vmatpush1.bf16.msra.mxu0 %v698
          %719 = vmatprep.subr.bf16.mxu0 0
          %720 = vmatpush1.bf16.msra.mxu0 %v699
          %721 = vmatprep.subr.bf16.mxu0 0
          %722 = vmatpush1.bf16.msra.mxu0 %v700
          %723 = vmatprep.subr.bf16.mxu0 0
          %724 = vmatpush1.bf16.msra.mxu0 %v701
          %725 = vmatprep.subr.bf16.mxu0 0
          %726 = vmatpush1.bf16.msra.mxu0 %v702
          %727 = vmatprep.subr.bf16.mxu0 0
          %728 = vmatpush1.bf16.msra.mxu0 0
          %729 = vmatprep.subr.bf16.mxu0 0
          %730 = vmatpush1.bf16.msra.mxu0 0
          %731 = vmatprep.subr.bf16.mxu0 0
          %732 = vmatpush1.bf16.msra.mxu0 0
          %733 = vmatprep.subr.bf16.mxu0 0
          %734 = vmatpush1.bf16.msra.mxu0 0
          %735 = vmatprep.subr.bf16.mxu0 0
          %736 = vmatpush1.bf16.msra.mxu0 0
          %737 = vmatprep.subr.bf16.mxu0 0
          %738 = vmatpush1.bf16.msra.mxu0 0
          %739 = vmatprep.subr.bf16.mxu0 0
          %740 = vmatpush1.bf16.msra.mxu0 0
          %741 = vmatprep.subr.bf16.mxu0 0
          %742 = vmatpush1.bf16.msra.mxu0 0
          %743 = vmatprep.mubr.bf16.mxu0 0
          %744 = vmatmul.mubr.bf16.gmra.mrb[0].mxu0 %v662
          %v745 = vpop.f32.mrb[0].mxu0
          %v746 = vadd.f32 0.0, %v745
          %v747 = vpop.f32.mrb[0].mxu0
          %v748 = vpop.f32.mrb[0].mxu0
          %v749 = vadd.f32 0.0, %v748
          %v750 = vpop.f32.mrb[0].mxu0
          %751 = vdwg.mxu0
          %v752 = vadd.f32 %v660, %v746
          %v753 = vadd.f32 %v661, %v749
          %754 = vst [vmem:[#allocation13] sm:$0xff] %v752
          %755 = vst [vmem:[#allocation13 + $0x8] sm:$0xff] %v753
        $region56: #{tpu_custom_call.1} parent=35 // pred_fallthru
          _
        // Predicated region
        $region61: #{tpu_custom_call.1} parent=35 // pred_check
          %p756 = pneg %p228
        $region62: #{tpu_custom_call.1} parent=35 // pred_check_branch
          %758 = sbr.rel (%p756) target = $region64
        $region63: #{tpu_custom_call.1} parent=35 // pred_region
          %s759 = smul.u32 2, %s40
          %s761 = ssub.s32 256, 256
          %762 = vsyncadd [#allocation9], %s761
          %s763 = smul.addr %s759, 128
          %s764 = scalar_lea.hbm %s7, %s763
          %s765 = sshll.u32 [#allocation13], 4
          %s766 = int_to_ptr.vmem [resolvable:$true] %s765
          %771 = dma.vmem_to_hbm [thread:$0]  %s766, 256, %s764, [#allocation9], 128, 128, 8
        $region64: #{tpu_custom_call.1} parent=35 // pred_fallthru
          _
        // Predicated region
        $region65: #{tpu_custom_call.1} parent=35 // pred_check
          %p772 = pneg %p228
        $region66: #{tpu_custom_call.1} parent=35 // pred_check_branch
          %774 = sbr.rel (%p772) target = $region68
        $region67: #{tpu_custom_call.1} parent=35 // pred_region
          %775 = dma.done [#allocation9], 256
        $region68: #{tpu_custom_call.1} parent=35 // pred_fallthru
          _
      $region36: #{tpu_custom_call.1} parent=5 // pred_fallthru
        _
      %p776 = scmp.le.s32.totalorder 2, %s30
      // Predicated region
      $region69: #{tpu_custom_call.1} parent=5 // pred_check
        %p777 = pneg %p776
      $region70: #{tpu_custom_call.1} parent=5 // pred_check_branch
        %779 = sbr.rel (%p777) target = $region72
      $region71: #{tpu_custom_call.1} parent=5 // pred_region
        %s780 = ssub.s32 %s30, 2
      $region72: #{tpu_custom_call.1} parent=5 // pred_fallthru
        _
    $region6: #{tpu_custom_call.1} parent=1 // loop_footer
      %s34 = sadd.s32 1, %s30
    $region7: #{tpu_custom_call.1} parent=1 // loop_footer_branch
      %29 = sbr.rel target = $region3
    $region8: #{tpu_custom_call.1} parent=1 // loop_exit
      _
    %781 = vsyncpa [#allocation8], 1
    %s782 = scalar_lea.sflag [#allocation8], 1
    %783 = vsyncpa %s782, 1
    %784 = vsyncpa [#allocation11], 1
    %s785 = scalar_lea.sflag [#allocation11], 1
    %786 = vsyncpa %s785, 1
    %787 = vsyncpa [#allocation9], 1
    %s788 = scalar_lea.sflag [#allocation9], 1
    %789 = vsyncpa %s788, 1

</llo_original>
